<compile_context>
chip_gen: v5e
topology: v5e:2x2
jax: 0.10.0
libtpu: 0.0.40
codegen_flags: <defaults>
</compile_context>

<pallas_src>
import functools

import jax
import jax.numpy as jnp
from jax.experimental import pallas as pl
from jax.experimental.pallas import tpu as pltpu

INPUT_SIZE = 640    # ResNet2d.relation_module = RelationModule(640, 256)
HIDDEN_SIZE = 256


# ----------------------------------------------------------------------------- kernel
def _relation_mlp_kernel(x_ref, w1t_ref, b1_ref, w2t_ref, b2_ref, o_ref):
    # In-kernel bf16 cast of x (hidden under MXU work); f32 accumulation on the MXU.
    x = x_ref[...].astype(w1t_ref.dtype)
    h = jnp.dot(x, w1t_ref[...], preferred_element_type=jnp.float32)
    h = jnp.maximum(h + b1_ref[...], 0.0)                     # f32 epilogue (v5e-safe)
    # out = hidden @ W2^T + b2 ; re-feed the MXU bf16, accumulate in f32.
    out = jnp.dot(h.astype(w2t_ref.dtype), w2t_ref[...],
                  preferred_element_type=jnp.float32)
    o_ref[...] = (out + b2_ref[...]).astype(o_ref.dtype)


# ------------------------------------------------------------------------- wrappers
def prepare_relation_params(w1, b1, w2, b2, compute_dtype=jnp.bfloat16):
    """One-time (outside the hot path) weight layout + dtype preparation.

    PyTorch layout: w1 (hidden, in), w2 (in, hidden); y = x @ W^T + b.
    Returns weights pre-transposed to row-major matmul layout and cast to the MXU
    compute dtype; biases stay f32 as (1, n) lane-dense rows.
    """
    w1t = jnp.asarray(w1).T.astype(compute_dtype)             # (in, hidden)
    w2t = jnp.asarray(w2).T.astype(compute_dtype)             # (hidden, in)
    b1r = jnp.asarray(b1, jnp.float32).reshape(1, -1)         # (1, hidden)
    b2r = jnp.asarray(b2, jnp.float32).reshape(1, -1)         # (1, in)
    return w1t, b1r, w2t, b2r


@functools.partial(jax.jit, static_argnames=("block_rows", "out_dtype"))
def relation_module_forward(x, w1t, b1r, w2t, b2r, *,
                            block_rows=2048, out_dtype=jnp.bfloat16):
    """RelationModule forward: relu(x @ W1^T + b1) @ W2^T + b2.

    x: (B, input_size) f32 (cast to bf16 in-kernel). Weights come from
    prepare_relation_params (bf16, pre-transposed). Output dtype is bf16 by default
    (memory-bound op); pass out_dtype=jnp.float32 if downstream strictly needs f32.
    """
    B, in_size = x.shape
    hidden = w1t.shape[1]

    # Batch tile: stream rows through the kernel; weights stay VMEM-resident.
    # Small batches keep grid=(1,) — no cross-TC split of weight-DMA-bound work.
    tb = B if B <= block_rows else block_rows
    grid = (pl.cdiv(B, tb),)

    out_itemsize = jnp.dtype(out_dtype).itemsize
    flops = 2 * B * in_size * hidden * 2                       # two matmuls
    bytes_accessed = (x.size * x.dtype.itemsize                # f32 x stream
                      + w1t.size * w1t.dtype.itemsize
                      + w2t.size * w2t.dtype.itemsize
                      + b1r.size * 4 + b2r.size * 4
                      + B * in_size * out_itemsize)            # output stream

    return pl.pallas_call(
        _relation_mlp_kernel,
        out_shape=jax.ShapeDtypeStruct((B, in_size), out_dtype),
        grid=grid,
        in_specs=[
            pl.BlockSpec((tb, in_size), lambda i: (i, 0)),       # x tiles stream (f32)
            pl.BlockSpec((in_size, hidden), lambda i: (0, 0)),   # W1^T resident (bf16)
            pl.BlockSpec((1, hidden), lambda i: (0, 0)),         # b1 resident (f32)
            pl.BlockSpec((hidden, in_size), lambda i: (0, 0)),   # W2^T resident (bf16)
            pl.BlockSpec((1, in_size), lambda i: (0, 0)),        # b2 resident (f32)
        ],
        out_specs=pl.BlockSpec((tb, in_size), lambda i: (i, 0)),
        compiler_params=pltpu.CompilerParams(
            dimension_semantics=("parallel",),      # only matters when grid >= 2
            vmem_limit_bytes=32 * 1024 * 1024,      # > v5e 16MiB default, < v7x 64MiB
        ),
        cost_estimate=pl.CostEstimate(
            flops=flops, transcendentals=0, bytes_accessed=bytes_accessed),
    )(x, w1t, b1r, w2t, b2r)


def resnet2d_forward(features, rel_params, out_dtype=jnp.bfloat16):
    """ResNet2d.forward tail, starting from flattened backbone features.

    Returns (features, enhanced_features, None) like the PyTorch module.
    """
    # TODO(synk): layer1..layer4 / avgpool / dropout need the external residual
    # `block` class, which is not provided in the spec; this forward starts from the
    # flattened (B, 640) features that backbone would produce.
    w1t, b1r, w2t, b2r = rel_params
    enhanced = relation_module_forward(features, w1t, b1r, w2t, b2r,
                                       out_dtype=out_dtype)
    return features, enhanced, None


# ----------------------------------------------------------------------------- init
def init_relation_module_params(key, input_size, hidden_size, dtype=jnp.float32):
    """Deterministic init mimicking PyTorch nn.Linear default (uniform +/- 1/sqrt(fan_in))."""
    k1, k2, k3, k4 = jax.random.split(key, 4)
    bound1 = 1.0 / (input_size ** 0.5)
    bound2 = 1.0 / (hidden_size ** 0.5)
    w1 = jax.random.uniform(k1, (hidden_size, input_size), dtype, -bound1, bound1)
    b1 = jax.random.uniform(k2, (hidden_size,), dtype, -bound1, bound1)
    w2 = jax.random.uniform(k3, (input_size, hidden_size), dtype, -bound2, bound2)
    b2 = jax.random.uniform(k4, (input_size,), dtype, -bound2, bound2)
    return w1, b1, w2, b2


# ----------------------------------------------------------------------------- main
if __name__ == "__main__":
    input_size, hidden_size = INPUT_SIZE, HIDDEN_SIZE
    batch = 16   # rows of flattened backbone features (B, 640)

    key = jax.random.PRNGKey(0)
    kx, kp = jax.random.split(key)
    features = jax.random.normal(kx, (batch, input_size), dtype=jnp.float32)

    w1, b1, w2, b2 = init_relation_module_params(kp, input_size, hidden_size)
    rel_params = prepare_relation_params(w1, b1, w2, b2)       # one-time prep

    feats_out, enhanced, aux = resnet2d_forward(features, rel_params)
    enhanced = jax.block_until_ready(enhanced)

    # Pure-JAX reference with the same bf16 operand quantization the MXU sees,
    # accumulation in f32 — matches the kernel up to accumulation-order rounding and
    # the final bf16 output quantization.
    xq = features.astype(jnp.bfloat16).astype(jnp.float32)
    w1q = w1.astype(jnp.bfloat16).astype(jnp.float32)
    w2q = w2.astype(jnp.bfloat16).astype(jnp.float32)
    h_ref = jnp.maximum(xq @ w1q.T + b1, 0.0)
    ref = h_ref.astype(jnp.bfloat16).astype(jnp.float32) @ w2q.T + b2

    assert enhanced.shape == (batch, input_size)
    assert enhanced.dtype == jnp.bfloat16
    assert aux is None
    assert bool(jnp.allclose(feats_out, features))
    err = float(jnp.max(jnp.abs(enhanced.astype(jnp.float32) - ref)))
    assert bool(jnp.allclose(enhanced.astype(jnp.float32), ref,
                             atol=2e-2, rtol=2e-2)), err

    print("KERNEL_OK")
</pallas_src>

<mosaic_0001>
module attributes {stable_mosaic.version = 11 : i64} {
  func.func @_relation_mlp_kernel(%arg0: i32, %arg1: memref<16x640xf32, #tpu.memory_space<vmem>>, %arg2: memref<640x256xbf16, #tpu.memory_space<vmem>>, %arg3: memref<1x256xf32, #tpu.memory_space<vmem>>, %arg4: memref<256x640xbf16, #tpu.memory_space<vmem>>, %arg5: memref<1x640xf32, #tpu.memory_space<vmem>>, %arg6: memref<16x640xbf16, #tpu.memory_space<vmem>>) attributes {dimension_semantics = [#tpu.dimension_semantics<parallel>], iteration_bounds = array<i64: 1>, scalar_prefetch = 0 : i64, scratch_operands = 0 : i64, tpu.core_type = #tpu.core_type<tc>, window_params = [{transform_indices = @transform_0, window_bounds = array<i64: 16, 640>}, {pipeline_mode = #tpu.pipeline_mode<synchronous>, transform_indices = @transform_1, window_bounds = array<i64: 640, 256>}, {pipeline_mode = #tpu.pipeline_mode<synchronous>, transform_indices = @transform_2, window_bounds = array<i64: 1, 256>}, {pipeline_mode = #tpu.pipeline_mode<synchronous>, transform_indices = @transform_3, window_bounds = array<i64: 256, 640>}, {pipeline_mode = #tpu.pipeline_mode<synchronous>, transform_indices = @transform_4, window_bounds = array<i64: 1, 640>}, {transform_indices = @transform_5, window_bounds = array<i64: 16, 640>}]} {
    %c0 = arith.constant 0 : index
    %c0_0 = arith.constant 0 : index
    %0 = vector.load %arg1[%c0, %c0_0] : memref<16x640xf32, #tpu.memory_space<vmem>>, vector<16x640xf32>
    %1 = arith.truncf %0 : vector<16x640xf32> to vector<16x640xbf16>
    %c0_1 = arith.constant 0 : index
    %c0_2 = arith.constant 0 : index
    %2 = vector.load %arg2[%c0_1, %c0_2] : memref<640x256xbf16, #tpu.memory_space<vmem>>, vector<640x256xbf16>
    %cst = arith.constant dense<0.000000e+00> : vector<16x256xf32>
    %3 = tpu.matmul %1, %2, %cst {dimension_numbers = #tpu.dot_dimension_numbers<[1], [0], [0], [1], [0, 0, 1, 1], [], []>} : vector<16x640xbf16>, vector<640x256xbf16>, vector<16x256xf32> -> vector<16x256xf32>
    %c0_3 = arith.constant 0 : index
    %c0_4 = arith.constant 0 : index
    %4 = vector.load %arg3[%c0_3, %c0_4] : memref<1x256xf32, #tpu.memory_space<vmem>>, vector<1x256xf32>
    %5 = vector.broadcast %4 : vector<1x256xf32> to vector<16x256xf32>
    %6 = arith.addf %3, %5 : vector<16x256xf32>
    %cst_5 = arith.constant 0.000000e+00 : f32
    %7 = vector.broadcast %cst_5 : f32 to vector<16x256xf32>
    %8 = arith.maximumf %6, %7 : vector<16x256xf32>
    %9 = arith.truncf %8 : vector<16x256xf32> to vector<16x256xbf16>
    %c0_6 = arith.constant 0 : index
    %c0_7 = arith.constant 0 : index
    %10 = vector.load %arg4[%c0_6, %c0_7] : memref<256x640xbf16, #tpu.memory_space<vmem>>, vector<256x640xbf16>
    %cst_8 = arith.constant dense<0.000000e+00> : vector<16x640xf32>
    %11 = tpu.matmul %9, %10, %cst_8 {dimension_numbers = #tpu.dot_dimension_numbers<[1], [0], [0], [1], [0, 0, 1, 1], [], []>} : vector<16x256xbf16>, vector<256x640xbf16>, vector<16x640xf32> -> vector<16x640xf32>
    %c0_9 = arith.constant 0 : index
    %c0_10 = arith.constant 0 : index
    %12 = vector.load %arg5[%c0_9, %c0_10] : memref<1x640xf32, #tpu.memory_space<vmem>>, vector<1x640xf32>
    %13 = vector.broadcast %12 : vector<1x640xf32> to vector<16x640xf32>
    %14 = arith.addf %11, %13 : vector<16x640xf32>
    %15 = arith.truncf %14 : vector<16x640xf32> to vector<16x640xbf16>
    %c0_11 = arith.constant 0 : index
    %c0_12 = arith.constant 0 : index
    %16 = vector.load %arg6[%c0_11, %c0_12] : memref<16x640xbf16, #tpu.memory_space<vmem>>, vector<16x640xbf16>
    tpu.vector_store %arg6[%c0_11, %c0_12], %15 {strides = array<i32>} : memref<16x640xbf16, #tpu.memory_space<vmem>>, vector<16x640xbf16>,
    return
  }
  func.func @transform_0(%arg0: i32) -> (i32, i32) {
    %c0_i32 = arith.constant 0 : i32
    %c0_i32_0 = arith.constant 0 : i32
    return %arg0, %c0_i32 : i32, i32
  }
  func.func @transform_1(%arg0: i32) -> (i32, i32) {
    %c0_i32 = arith.constant 0 : i32
    %c0_i32_0 = arith.constant 0 : i32
    %c0_i32_1 = arith.constant 0 : i32
    return %c0_i32, %c0_i32_0 : i32, i32
  }
  func.func @transform_2(%arg0: i32) -> (i32, i32) {
    %c0_i32 = arith.constant 0 : i32
    %c0_i32_0 = arith.constant 0 : i32
    %c0_i32_1 = arith.constant 0 : i32
    return %c0_i32, %c0_i32_0 : i32, i32
  }
  func.func @transform_3(%arg0: i32) -> (i32, i32) {
    %c0_i32 = arith.constant 0 : i32
    %c0_i32_0 = arith.constant 0 : i32
    %c0_i32_1 = arith.constant 0 : i32
    return %c0_i32, %c0_i32_0 : i32, i32
  }
  func.func @transform_4(%arg0: i32) -> (i32, i32) {
    %c0_i32 = arith.constant 0 : i32
    %c0_i32_0 = arith.constant 0 : i32
    %c0_i32_1 = arith.constant 0 : i32
    return %c0_i32, %c0_i32_0 : i32, i32
  }
  func.func @transform_5(%arg0: i32) -> (i32, i32) {
    %c0_i32 = arith.constant 0 : i32
    %c0_i32_0 = arith.constant 0 : i32
    return %arg0, %c0_i32 : i32, i32
  }
}

</mosaic_0001>

<llo_original>
// kernel: relation_module_forward.1
$region0: #{relation_module_forward.1}
  #allocation0 [shape = 'u32[]', space=smem, size = 0x4, offset = 0x4, fixed_abs, tag = 'smem constant byte address 0x4 - core index']
  #allocation1 [shape = 'u32[72,128]{1,0:T(1,128)}', space=vmem, size = 0x9000, scoped, tag = 'internal scratch']
  %s0 = inlined_call_operand.hbm [shape: f32[16,640], index: 0, kind: input, shape index: {}]
  %s1 = inlined_call_operand.hbm [shape: bf16[640,256], index: 1, kind: input, shape index: {}]
  %s2 = inlined_call_operand.hbm [shape: f32[1,256], index: 2, kind: input, shape index: {}]
  %s3 = inlined_call_operand.hbm [shape: bf16[256,640], index: 3, kind: input, shape index: {}]
  %s4 = inlined_call_operand.hbm [shape: f32[1,640], index: 4, kind: input, shape index: {}]
  %s5 = inlined_call_operand.hbm [shape: bf16[16,640], index: 5, kind: output, shape index: {}]
  %s6 = sld [smem:[#allocation0]]
  $region50: #{relation_module_forward.1} parent=0
    _
  %s8 = ssub.s32 1, %s6
  %s9 = scalar_select 0, %s8, %s6
  $region1: #{relation_module_forward.1} parent=0
    #allocation2 [shape = 'u8[40960]{0}', space=vmem, size = 0xa000, scoped, tag = 'input window, operand 0, single buffered']
    #allocation3 [shape = 's32[1]{0}', space=sflag, size = 0x4, scoped, tag = 'scoped memory for relation_module_forward.1']
    #allocation4 [shape = 's32[1]{0}', space=sflag, size = 0x4, scoped, tag = 'scoped memory for relation_module_forward.1']
    #allocation5 [shape = 'u8[327680]{0}', space=vmem, size = 0x50000, scoped, tag = 'input window, operand 1, single buffered']
    #allocation6 [shape = 's32[1]{0}', space=sflag, size = 0x4, scoped, tag = 'scoped memory for relation_module_forward.1']
    #allocation7 [shape = 'u8[1024]{0}', space=vmem, size = 0x400, scoped, tag = 'input window, operand 2, single buffered']
    #allocation8 [shape = 'u8[327680]{0}', space=vmem, size = 0x50000, scoped, tag = 'input window, operand 3, single buffered']
    #allocation9 [shape = 's32[1]{0}', space=sflag, size = 0x4, scoped, tag = 'scoped memory for relation_module_forward.1']
    #allocation10 [shape = 'u8[2560]{0}', space=vmem, size = 0xc00, scoped, tag = 'input window, operand 4, single buffered']
    #allocation11 [shape = 'u8[20480]{0}', space=vmem, size = 0x5000, scoped, tag = 'output window, operand 0, single buffered']
    %10 = vsyncpa [#allocation3], 0
    %11 = vsyncpa [#allocation6], 0
    %12 = vsyncpa [#allocation9], 0
    %13 = vsyncpa [#allocation4], 0
    // Predicated region
    $region2: #{relation_module_forward.1} parent=1 // pred_check
      _
    $region3: #{relation_module_forward.1} parent=1 // pred_check_branch
      %15 = sbr.rel (0) target = $region5
    $region4: #{relation_module_forward.1} parent=1 // pred_region
      %17 = vsyncadd [#allocation3], 0
      %s18 = sshll.u32 %s0, 4
      %s19 = int_to_ptr.hbm [resolvable:$true] %s18
      %s20 = sshll.u32 [#allocation2], 4
      %s21 = int_to_ptr.vmem [resolvable:$true] %s20
      %26 = dma.hbm_to_vmem [thread:$0]  %s19, 1280, %s21, [#allocation3], 640, 640, 40
    $region5: #{relation_module_forward.1} parent=1 // pred_fallthru
      _
    // Predicated region
    $region6: #{relation_module_forward.1} parent=1 // pred_check
      _
    $region7: #{relation_module_forward.1} parent=1 // pred_check_branch
      %28 = sbr.rel (0) target = $region9
    $region8: #{relation_module_forward.1} parent=1 // pred_region
      %30 = vsyncadd [#allocation6], 0
      %s31 = sshll.u32 %s1, 4
      %s32 = int_to_ptr.hbm [resolvable:$true] %s31
      %s33 = sshll.u32 [#allocation5], 4
      %s34 = int_to_ptr.vmem [resolvable:$true] %s33
      %39 = dma.hbm_to_vmem [thread:$0]  %s32, 10240, %s34, [#allocation6], 128, 128, 8
    $region9: #{relation_module_forward.1} parent=1 // pred_fallthru
      _
    // Predicated region
    $region10: #{relation_module_forward.1} parent=1 // pred_check
      _
    $region11: #{relation_module_forward.1} parent=1 // pred_check_branch
      %41 = sbr.rel (0) target = $region13
    $region12: #{relation_module_forward.1} parent=1 // pred_region
      %43 = vsyncadd [#allocation6], 0
      %s45 = sshll.u32 %s2, 4
      %s46 = int_to_ptr.hbm [resolvable:$true] %s45
      %s47 = sshll.u32 [#allocation7], 4
      %s48 = int_to_ptr.vmem [resolvable:$true] %s47
      %50 = dma.hbm_to_vmem [thread:$0]  %s46, 32, %s48, [#allocation6]
    $region13: #{relation_module_forward.1} parent=1 // pred_fallthru
      _
    // Predicated region
    $region14: #{relation_module_forward.1} parent=1 // pred_check
      _
    $region15: #{relation_module_forward.1} parent=1 // pred_check_branch
      %52 = sbr.rel (0) target = $region17
    $region16: #{relation_module_forward.1} parent=1 // pred_region
      %54 = vsyncadd [#allocation9], 0
      %s55 = sshll.u32 %s3, 4
      %s56 = int_to_ptr.hbm [resolvable:$true] %s55
      %s57 = sshll.u32 [#allocation8], 4
      %s58 = int_to_ptr.vmem [resolvable:$true] %s57
      %63 = dma.hbm_to_vmem [thread:$0]  %s56, 10240, %s58, [#allocation9], 320, 320, 20
    $region17: #{relation_module_forward.1} parent=1 // pred_fallthru
      _
    // Predicated region
    $region18: #{relation_module_forward.1} parent=1 // pred_check
      _
    $region19: #{relation_module_forward.1} parent=1 // pred_check_branch
      %65 = sbr.rel (0) target = $region21
    $region20: #{relation_module_forward.1} parent=1 // pred_region
      %67 = vsyncadd [#allocation9], 0
      %s69 = sshll.u32 %s4, 4
      %s70 = int_to_ptr.hbm [resolvable:$true] %s69
      %s71 = sshll.u32 [#allocation10], 4
      %s72 = int_to_ptr.vmem [resolvable:$true] %s71
      %74 = dma.hbm_to_vmem [thread:$0]  %s70, 80, %s72, [#allocation9]
    $region21: #{relation_module_forward.1} parent=1 // pred_fallthru
      _
    // Predicated region
    $region22: #{relation_module_forward.1} parent=1 // pred_check
      _
    $region23: #{relation_module_forward.1} parent=1 // pred_check_branch
      %76 = sbr.rel (0) target = $region25
    $region24: #{relation_module_forward.1} parent=1 // pred_region
      %78 = dma.done [#allocation3], 1280
    $region25: #{relation_module_forward.1} parent=1 // pred_fallthru
      _
    // Predicated region
    $region26: #{relation_module_forward.1} parent=1 // pred_check
      _
    $region27: #{relation_module_forward.1} parent=1 // pred_check_branch
      %80 = sbr.rel (0) target = $region29
    $region28: #{relation_module_forward.1} parent=1 // pred_region
      %82 = dma.done [#allocation6], 10240
    $region29: #{relation_module_forward.1} parent=1 // pred_fallthru
      _
    // Predicated region
    $region30: #{relation_module_forward.1} parent=1 // pred_check
      _
    $region31: #{relation_module_forward.1} parent=1 // pred_check_branch
      %84 = sbr.rel (0) target = $region33
    $region32: #{relation_module_forward.1} parent=1 // pred_region
      %86 = dma.done [#allocation6], 32
    $region33: #{relation_module_forward.1} parent=1 // pred_fallthru
      _
    // Predicated region
    $region34: #{relation_module_forward.1} parent=1 // pred_check
      _
    $region35: #{relation_module_forward.1} parent=1 // pred_check_branch
      %88 = sbr.rel (0) target = $region37
    $region36: #{relation_module_forward.1} parent=1 // pred_region
      %90 = dma.done [#allocation9], 10240
    $region37: #{relation_module_forward.1} parent=1 // pred_fallthru
      _
    // Predicated region
    $region38: #{relation_module_forward.1} parent=1 // pred_check
      _
    $region39: #{relation_module_forward.1} parent=1 // pred_check_branch
      %92 = sbr.rel (0) target = $region41
    $region40: #{relation_module_forward.1} parent=1 // pred_region
      %94 = dma.done [#allocation9], 80
    $region41: #{relation_module_forward.1} parent=1 // pred_fallthru
      _
    %v95 = vld [vmem:[#allocation2] sm:$0xff]
    %v96 = vld [vmem:[#allocation2 + $0x8] sm:$0xff]
    %v97 = vld [vmem:[#allocation2 + $0x10] sm:$0xff]
    %v98 = vld [vmem:[#allocation2 + $0x18] sm:$0xff]
    %v99 = vld [vmem:[#allocation2 + $0x20] sm:$0xff]
    %v100 = vld [vmem:[#allocation2 + $0x28] sm:$0xff]
    %v101 = vld [vmem:[#allocation2 + $0x30] sm:$0xff]
    %v102 = vld [vmem:[#allocation2 + $0x38] sm:$0xff]
    %v103 = vld [vmem:[#allocation2 + $0x40] sm:$0xff]
    %v104 = vld [vmem:[#allocation2 + $0x48] sm:$0xff]
    %v105 = vpack.c.bf16 %v100, %v95
    %v106 = vpack.c.bf16 %v101, %v96
    %v107 = vpack.c.bf16 %v102, %v97
    %v108 = vpack.c.bf16 %v103, %v98
    %v109 = vpack.c.bf16 %v104, %v99
    %v110 = vld [vmem:[#allocation5] sm:$0xff]
    %v111 = vld [vmem:[#allocation5 + $0x8] sm:$0xff]
    %v112 = vld [vmem:[#allocation5 + $0x10] sm:$0xff]
    %v113 = vld [vmem:[#allocation5 + $0x18] sm:$0xff]
    %v114 = vld [vmem:[#allocation5 + $0x20] sm:$0xff]
    %v115 = vld [vmem:[#allocation5 + $0x28] sm:$0xff]
    %v116 = vld [vmem:[#allocation5 + $0x30] sm:$0xff]
    %v117 = vld [vmem:[#allocation5 + $0x38] sm:$0xff]
    %v118 = vld [vmem:[#allocation5 + $0x40] sm:$0xff]
    %v119 = vld [vmem:[#allocation5 + $0x48] sm:$0xff]
    %v120 = vld [vmem:[#allocation5 + $0x50] sm:$0xff]
    %v121 = vld [vmem:[#allocation5 + $0x58] sm:$0xff]
    %v122 = vld [vmem:[#allocation5 + $0x60] sm:$0xff]
    %v123 = vld [vmem:[#allocation5 + $0x68] sm:$0xff]
    %v124 = vld [vmem:[#allocation5 + $0x70] sm:$0xff]
    %v125 = vld [vmem:[#allocation5 + $0x78] sm:$0xff]
    %v126 = vld [vmem:[#allocation5 + $0x80] sm:$0xff]
    %v127 = vld [vmem:[#allocation5 + $0x88] sm:$0xff]
    %v128 = vld [vmem:[#allocation5 + $0x90] sm:$0xff]
    %v129 = vld [vmem:[#allocation5 + $0x98] sm:$0xff]
    %v130 = vld [vmem:[#allocation5 + $0xa0] sm:$0xff]
    %v131 = vld [vmem:[#allocation5 + $0xa8] sm:$0xff]
    %v132 = vld [vmem:[#allocation5 + $0xb0] sm:$0xff]
    %v133 = vld [vmem:[#allocation5 + $0xb8] sm:$0xff]
    %v134 = vld [vmem:[#allocation5 + $0xc0] sm:$0xff]
    %v135 = vld [vmem:[#allocation5 + $0xc8] sm:$0xff]
    %v136 = vld [vmem:[#allocation5 + $0xd0] sm:$0xff]
    %v137 = vld [vmem:[#allocation5 + $0xd8] sm:$0xff]
    %v138 = vld [vmem:[#allocation5 + $0xe0] sm:$0xff]
    %v139 = vld [vmem:[#allocation5 + $0xe8] sm:$0xff]
    %v140 = vld [vmem:[#allocation5 + $0xf0] sm:$0xff]
    %v141 = vld [vmem:[#allocation5 + $0xf8] sm:$0xff]
    %v142 = vld [vmem:[#allocation5 + $0x100] sm:$0xff]
    %v143 = vld [vmem:[#allocation5 + $0x108] sm:$0xff]
    %v144 = vld [vmem:[#allocation5 + $0x110] sm:$0xff]
    %v145 = vld [vmem:[#allocation5 + $0x118] sm:$0xff]
    %v146 = vld [vmem:[#allocation5 + $0x120] sm:$0xff]
    %v147 = vld [vmem:[#allocation5 + $0x128] sm:$0xff]
    %v148 = vld [vmem:[#allocation5 + $0x130] sm:$0xff]
    %v149 = vld [vmem:[#allocation5 + $0x138] sm:$0xff]
    %v150 = vld [vmem:[#allocation5 + $0x140] sm:$0xff]
    %v151 = vld [vmem:[#allocation5 + $0x148] sm:$0xff]
    %v152 = vld [vmem:[#allocation5 + $0x150] sm:$0xff]
    %v153 = vld [vmem:[#allocation5 + $0x158] sm:$0xff]
    %v154 = vld [vmem:[#allocation5 + $0x160] sm:$0xff]
    %v155 = vld [vmem:[#allocation5 + $0x168] sm:$0xff]
    %v156 = vld [vmem:[#allocation5 + $0x170] sm:$0xff]
    %v157 = vld [vmem:[#allocation5 + $0x178] sm:$0xff]
    %v158 = vld [vmem:[#allocation5 + $0x180] sm:$0xff]
    %v159 = vld [vmem:[#allocation5 + $0x188] sm:$0xff]
    %v160 = vld [vmem:[#allocation5 + $0x190] sm:$0xff]
    %v161 = vld [vmem:[#allocation5 + $0x198] sm:$0xff]
    %v162 = vld [vmem:[#allocation5 + $0x1a0] sm:$0xff]
    %v163 = vld [vmem:[#allocation5 + $0x1a8] sm:$0xff]
    %v164 = vld [vmem:[#allocation5 + $0x1b0] sm:$0xff]
    %v165 = vld [vmem:[#allocation5 + $0x1b8] sm:$0xff]
    %v166 = vld [vmem:[#allocation5 + $0x1c0] sm:$0xff]
    %v167 = vld [vmem:[#allocation5 + $0x1c8] sm:$0xff]
    %v168 = vld [vmem:[#allocation5 + $0x1d0] sm:$0xff]
    %v169 = vld [vmem:[#allocation5 + $0x1d8] sm:$0xff]
    %v170 = vld [vmem:[#allocation5 + $0x1e0] sm:$0xff]
    %v171 = vld [vmem:[#allocation5 + $0x1e8] sm:$0xff]
    %v172 = vld [vmem:[#allocation5 + $0x1f0] sm:$0xff]
    %v173 = vld [vmem:[#allocation5 + $0x1f8] sm:$0xff]
    %v174 = vld [vmem:[#allocation5 + $0x200] sm:$0xff]
    %v175 = vld [vmem:[#allocation5 + $0x208] sm:$0xff]
    %v176 = vld [vmem:[#allocation5 + $0x210] sm:$0xff]
    %v177 = vld [vmem:[#allocation5 + $0x218] sm:$0xff]
    %v178 = vld [vmem:[#allocation5 + $0x220] sm:$0xff]
    %v179 = vld [vmem:[#allocation5 + $0x228] sm:$0xff]
    %v180 = vld [vmem:[#allocation5 + $0x230] sm:$0xff]
    %v181 = vld [vmem:[#allocation5 + $0x238] sm:$0xff]
    %v182 = vld [vmem:[#allocation5 + $0x240] sm:$0xff]
    %v183 = vld [vmem:[#allocation5 + $0x248] sm:$0xff]
    %v184 = vld [vmem:[#allocation5 + $0x250] sm:$0xff]
    %v185 = vld [vmem:[#allocation5 + $0x258] sm:$0xff]
    %v186 = vld [vmem:[#allocation5 + $0x260] sm:$0xff]
    %v187 = vld [vmem:[#allocation5 + $0x268] sm:$0xff]
    %v188 = vld [vmem:[#allocation5 + $0x270] sm:$0xff]
    %v189 = vld [vmem:[#allocation5 + $0x278] sm:$0xff]
    %v190 = vld [vmem:[#allocation7] sm:$0x3]
    %v192 = vperm.slane %v190, 0
    %v193 = vperm.slane %v190, 1
    %v276 = vunpack.c.l.b16 %v110
    %v277 = vunpack.c.h.b16 %v110
    %v278 = vunpack.c.l.b16 %v111
    %v279 = vunpack.c.h.b16 %v111
    %v280 = vunpack.c.l.b16 %v112
    %v281 = vunpack.c.h.b16 %v112
    %v282 = vunpack.c.l.b16 %v113
    %v283 = vunpack.c.h.b16 %v113
    %v284 = vunpack.c.l.b16 %v114
    %v285 = vunpack.c.h.b16 %v114
    %v286 = vunpack.c.l.b16 %v115
    %v287 = vunpack.c.h.b16 %v115
    %v288 = vunpack.c.l.b16 %v116
    %v289 = vunpack.c.h.b16 %v116
    %v290 = vunpack.c.l.b16 %v117
    %v291 = vunpack.c.h.b16 %v117
    %v292 = vunpack.c.l.b16 %v118
    %v293 = vunpack.c.h.b16 %v118
    %v294 = vunpack.c.l.b16 %v119
    %v295 = vunpack.c.h.b16 %v119
    %v296 = vunpack.c.l.b16 %v120
    %v297 = vunpack.c.h.b16 %v120
    %v298 = vunpack.c.l.b16 %v121
    %v299 = vunpack.c.h.b16 %v121
    %v300 = vunpack.c.l.b16 %v122
    %v301 = vunpack.c.h.b16 %v122
    %v302 = vunpack.c.l.b16 %v123
    %v303 = vunpack.c.h.b16 %v123
    %v304 = vunpack.c.l.b16 %v124
    %v305 = vunpack.c.h.b16 %v124
    %v306 = vunpack.c.l.b16 %v125
    %v307 = vunpack.c.h.b16 %v125
    %v308 = vunpack.c.l.b16 %v126
    %v309 = vunpack.c.h.b16 %v126
    %v310 = vunpack.c.l.b16 %v127
    %v311 = vunpack.c.h.b16 %v127
    %v312 = vunpack.c.l.b16 %v128
    %v313 = vunpack.c.h.b16 %v128
    %v314 = vunpack.c.l.b16 %v129
    %v315 = vunpack.c.h.b16 %v129
    %v316 = vunpack.c.l.b16 %v130
    %v317 = vunpack.c.h.b16 %v130
    %v318 = vunpack.c.l.b16 %v131
    %v319 = vunpack.c.h.b16 %v131
    %v320 = vunpack.c.l.b16 %v132
    %v321 = vunpack.c.h.b16 %v132
    %v322 = vunpack.c.l.b16 %v133
    %v323 = vunpack.c.h.b16 %v133
    %v324 = vunpack.c.l.b16 %v134
    %v325 = vunpack.c.h.b16 %v134
    %v326 = vunpack.c.l.b16 %v135
    %v327 = vunpack.c.h.b16 %v135
    %v328 = vunpack.c.l.b16 %v136
    %v329 = vunpack.c.h.b16 %v136
    %v330 = vunpack.c.l.b16 %v137
    %v331 = vunpack.c.h.b16 %v137
    %v332 = vunpack.c.l.b16 %v138
    %v333 = vunpack.c.h.b16 %v138
    %v334 = vunpack.c.l.b16 %v139
    %v335 = vunpack.c.h.b16 %v139
    %v336 = vunpack.c.l.b16 %v140
    %v337 = vunpack.c.h.b16 %v140
    %v338 = vunpack.c.l.b16 %v141
    %v339 = vunpack.c.h.b16 %v141
    %v340 = vunpack.c.l.b16 %v142
    %v341 = vunpack.c.h.b16 %v142
    %v342 = vunpack.c.l.b16 %v143
    %v343 = vunpack.c.h.b16 %v143
    %v344 = vunpack.c.l.b16 %v144
    %v345 = vunpack.c.h.b16 %v144
    %v346 = vunpack.c.l.b16 %v145
    %v347 = vunpack.c.h.b16 %v145
    %v348 = vunpack.c.l.b16 %v146
    %v349 = vunpack.c.h.b16 %v146
    %v350 = vunpack.c.l.b16 %v147
    %v351 = vunpack.c.h.b16 %v147
    %v352 = vunpack.c.l.b16 %v148
    %v353 = vunpack.c.h.b16 %v148
    %v354 = vunpack.c.l.b16 %v149
    %v355 = vunpack.c.h.b16 %v149
    %v356 = vunpack.c.l.b16 %v150
    %v357 = vunpack.c.h.b16 %v150
    %v358 = vunpack.c.l.b16 %v151
    %v359 = vunpack.c.h.b16 %v151
    %v360 = vunpack.c.l.b16 %v152
    %v361 = vunpack.c.h.b16 %v152
    %v362 = vunpack.c.l.b16 %v153
    %v363 = vunpack.c.h.b16 %v153
    %v364 = vunpack.c.l.b16 %v154
    %v365 = vunpack.c.h.b16 %v154
    %v366 = vunpack.c.l.b16 %v155
    %v367 = vunpack.c.h.b16 %v155
    %v368 = vunpack.c.l.b16 %v156
    %v369 = vunpack.c.h.b16 %v156
    %v370 = vunpack.c.l.b16 %v157
    %v371 = vunpack.c.h.b16 %v157
    %v372 = vunpack.c.l.b16 %v158
    %v373 = vunpack.c.h.b16 %v158
    %v374 = vunpack.c.l.b16 %v159
    %v375 = vunpack.c.h.b16 %v159
    %v376 = vunpack.c.l.b16 %v160
    %v377 = vunpack.c.h.b16 %v160
    %v378 = vunpack.c.l.b16 %v161
    %v379 = vunpack.c.h.b16 %v161
    %v380 = vunpack.c.l.b16 %v162
    %v381 = vunpack.c.h.b16 %v162
    %v382 = vunpack.c.l.b16 %v163
    %v383 = vunpack.c.h.b16 %v163
    %v384 = vunpack.c.l.b16 %v164
    %v385 = vunpack.c.h.b16 %v164
    %v386 = vunpack.c.l.b16 %v165
    %v387 = vunpack.c.h.b16 %v165
    %v388 = vunpack.c.l.b16 %v166
    %v389 = vunpack.c.h.b16 %v166
    %v390 = vunpack.c.l.b16 %v167
    %v391 = vunpack.c.h.b16 %v167
    %v392 = vunpack.c.l.b16 %v168
    %v393 = vunpack.c.h.b16 %v168
    %v394 = vunpack.c.l.b16 %v169
    %v395 = vunpack.c.h.b16 %v169
    %v396 = vunpack.c.l.b16 %v170
    %v397 = vunpack.c.h.b16 %v170
    %v398 = vunpack.c.l.b16 %v171
    %v399 = vunpack.c.h.b16 %v171
    %v400 = vunpack.c.l.b16 %v172
    %v401 = vunpack.c.h.b16 %v172
    %v402 = vunpack.c.l.b16 %v173
    %v403 = vunpack.c.h.b16 %v173
    %v404 = vunpack.c.l.b16 %v174
    %v405 = vunpack.c.h.b16 %v174
    %v406 = vunpack.c.l.b16 %v175
    %v407 = vunpack.c.h.b16 %v175
    %v408 = vunpack.c.l.b16 %v176
    %v409 = vunpack.c.h.b16 %v176
    %v410 = vunpack.c.l.b16 %v177
    %v411 = vunpack.c.h.b16 %v177
    %v412 = vunpack.c.l.b16 %v178
    %v413 = vunpack.c.h.b16 %v178
    %v414 = vunpack.c.l.b16 %v179
    %v415 = vunpack.c.h.b16 %v179
    %v416 = vunpack.c.l.b16 %v180
    %v417 = vunpack.c.h.b16 %v180
    %v418 = vunpack.c.l.b16 %v181
    %v419 = vunpack.c.h.b16 %v181
    %v420 = vunpack.c.l.b16 %v182
    %v421 = vunpack.c.h.b16 %v182
    %v422 = vunpack.c.l.b16 %v183
    %v423 = vunpack.c.h.b16 %v183
    %v424 = vunpack.c.l.b16 %v184
    %v425 = vunpack.c.h.b16 %v184
    %v426 = vunpack.c.l.b16 %v185
    %v427 = vunpack.c.h.b16 %v185
    %v428 = vunpack.c.l.b16 %v186
    %v429 = vunpack.c.h.b16 %v186
    %v430 = vunpack.c.l.b16 %v187
    %v431 = vunpack.c.h.b16 %v187
    %v432 = vunpack.c.l.b16 %v188
    %v433 = vunpack.c.h.b16 %v188
    %v434 = vunpack.c.l.b16 %v189
    %v435 = vunpack.c.h.b16 %v189
    %v436 = vpack.c.b16 %v278, %v276
    %v437 = vpack.c.b16 %v279, %v277
    %v438 = vpack.c.b16 %v282, %v280
    %v439 = vpack.c.b16 %v283, %v281
    %v440 = vpack.c.b16 %v286, %v284
    %v441 = vpack.c.b16 %v287, %v285
    %v442 = vpack.c.b16 %v290, %v288
    %v443 = vpack.c.b16 %v291, %v289
    %v444 = vpack.c.b16 %v294, %v292
    %v445 = vpack.c.b16 %v295, %v293
    %v446 = vpack.c.b16 %v298, %v296
    %v447 = vpack.c.b16 %v299, %v297
    %v448 = vpack.c.b16 %v302, %v300
    %v449 = vpack.c.b16 %v303, %v301
    %v450 = vpack.c.b16 %v306, %v304
    %v451 = vpack.c.b16 %v307, %v305
    %v452 = vpack.c.b16 %v310, %v308
    %v453 = vpack.c.b16 %v311, %v309
    %v454 = vpack.c.b16 %v314, %v312
    %v455 = vpack.c.b16 %v315, %v313
    %v456 = vpack.c.b16 %v318, %v316
    %v457 = vpack.c.b16 %v319, %v317
    %v458 = vpack.c.b16 %v322, %v320
    %v459 = vpack.c.b16 %v323, %v321
    %v460 = vpack.c.b16 %v326, %v324
    %v461 = vpack.c.b16 %v327, %v325
    %v462 = vpack.c.b16 %v330, %v328
    %v463 = vpack.c.b16 %v331, %v329
    %v464 = vpack.c.b16 %v334, %v332
    %v465 = vpack.c.b16 %v335, %v333
    %v466 = vpack.c.b16 %v338, %v336
    %v467 = vpack.c.b16 %v339, %v337
    %v468 = vpack.c.b16 %v342, %v340
    %v469 = vpack.c.b16 %v343, %v341
    %v470 = vpack.c.b16 %v346, %v344
    %v471 = vpack.c.b16 %v347, %v345
    %v472 = vpack.c.b16 %v350, %v348
    %v473 = vpack.c.b16 %v351, %v349
    %v474 = vpack.c.b16 %v354, %v352
    %v475 = vpack.c.b16 %v355, %v353
    %v476 = vpack.c.b16 %v358, %v356
    %v477 = vpack.c.b16 %v359, %v357
    %v478 = vpack.c.b16 %v362, %v360
    %v479 = vpack.c.b16 %v363, %v361
    %v480 = vpack.c.b16 %v366, %v364
    %v481 = vpack.c.b16 %v367, %v365
    %v482 = vpack.c.b16 %v370, %v368
    %v483 = vpack.c.b16 %v371, %v369
    %v484 = vpack.c.b16 %v374, %v372
    %v485 = vpack.c.b16 %v375, %v373
    %v486 = vpack.c.b16 %v378, %v376
    %v487 = vpack.c.b16 %v379, %v377
    %v488 = vpack.c.b16 %v382, %v380
    %v489 = vpack.c.b16 %v383, %v381
    %v490 = vpack.c.b16 %v386, %v384
    %v491 = vpack.c.b16 %v387, %v385
    %v492 = vpack.c.b16 %v390, %v388
    %v493 = vpack.c.b16 %v391, %v389
    %v494 = vpack.c.b16 %v394, %v392
    %v495 = vpack.c.b16 %v395, %v393
    %v496 = vpack.c.b16 %v398, %v396
    %v497 = vpack.c.b16 %v399, %v397
    %v498 = vpack.c.b16 %v402, %v400
    %v499 = vpack.c.b16 %v403, %v401
    %v500 = vpack.c.b16 %v406, %v404
    %v501 = vpack.c.b16 %v407, %v405
    %v502 = vpack.c.b16 %v410, %v408
    %v503 = vpack.c.b16 %v411, %v409
    %v504 = vpack.c.b16 %v414, %v412
    %v505 = vpack.c.b16 %v415, %v413
    %v506 = vpack.c.b16 %v418, %v416
    %v507 = vpack.c.b16 %v419, %v417
    %v508 = vpack.c.b16 %v422, %v420
    %v509 = vpack.c.b16 %v423, %v421
    %v510 = vpack.c.b16 %v426, %v424
    %v511 = vpack.c.b16 %v427, %v425
    %v512 = vpack.c.b16 %v430, %v428
    %v513 = vpack.c.b16 %v431, %v429
    %v514 = vpack.c.b16 %v434, %v432
    %v515 = vpack.c.b16 %v435, %v433
    %596 = vmatpush.bf16.msra.mxu0 %v450
    %597 = vmatpush.bf16.msra.mxu0 %v448
    %598 = vmatpush.bf16.msra.mxu0 %v446
    %599 = vmatpush.bf16.msra.mxu0 %v444
    %600 = vmatpush.bf16.msra.mxu0 %v442
    %601 = vmatpush.bf16.msra.mxu0 %v440
    %602 = vmatpush.bf16.msra.mxu0 %v438
    %603 = vmatpush.bf16.msra.mxu0 %v436
    %604 = vmatmul.bf16.gmra.mxu0 %v105
    %v605 = vpop.f32.mrf.mxu0
    %v606 = vadd.f32 %v192, %v605
    %v607 = vpop.f32.mrf.mxu0
    %v608 = vadd.f32 %v192, %v607
    %609 = vdwg.mxu0
    %610 = vmatpush.bf16.msra.mxu0 %v466
    %611 = vmatpush.bf16.msra.mxu0 %v464
    %612 = vmatpush.bf16.msra.mxu0 %v462
    %613 = vmatpush.bf16.msra.mxu0 %v460
    %614 = vmatpush.bf16.msra.mxu0 %v458
    %615 = vmatpush.bf16.msra.mxu0 %v456
    %616 = vmatpush.bf16.msra.mxu0 %v454
    %617 = vmatpush.bf16.msra.mxu0 %v452
    %618 = vmatmul.bf16.gmra.mxu0 %v106
    %v619 = vpop.f32.mrf.mxu0
    %v620 = vadd.f32 %v606, %v619
    %v621 = vpop.f32.mrf.mxu0
    %v622 = vadd.f32 %v608, %v621
    %623 = vdwg.mxu0
    %624 = vmatpush.bf16.msra.mxu0 %v482
    %625 = vmatpush.bf16.msra.mxu0 %v480
    %626 = vmatpush.bf16.msra.mxu0 %v478
    %627 = vmatpush.bf16.msra.mxu0 %v476
    %628 = vmatpush.bf16.msra.mxu0 %v474
    %629 = vmatpush.bf16.msra.mxu0 %v472
    %630 = vmatpush.bf16.msra.mxu0 %v470
    %631 = vmatpush.bf16.msra.mxu0 %v468
    %632 = vmatmul.bf16.gmra.mxu0 %v107
    %v633 = vpop.f32.mrf.mxu0
    %v634 = vadd.f32 %v620, %v633
    %v635 = vpop.f32.mrf.mxu0
    %v636 = vadd.f32 %v622, %v635
    %637 = vdwg.mxu0
    %638 = vmatpush.bf16.msra.mxu0 %v498
    %639 = vmatpush.bf16.msra.mxu0 %v496
    %640 = vmatpush.bf16.msra.mxu0 %v494
    %641 = vmatpush.bf16.msra.mxu0 %v492
    %642 = vmatpush.bf16.msra.mxu0 %v490
    %643 = vmatpush.bf16.msra.mxu0 %v488
    %644 = vmatpush.bf16.msra.mxu0 %v486
    %645 = vmatpush.bf16.msra.mxu0 %v484
    %646 = vmatmul.bf16.gmra.mxu0 %v108
    %v647 = vpop.f32.mrf.mxu0
    %v648 = vadd.f32 %v634, %v647
    %v649 = vpop.f32.mrf.mxu0
    %v650 = vadd.f32 %v636, %v649
    %651 = vdwg.mxu0
    %652 = vmatpush.bf16.msra.mxu0 %v514
    %653 = vmatpush.bf16.msra.mxu0 %v512
    %654 = vmatpush.bf16.msra.mxu0 %v510
    %655 = vmatpush.bf16.msra.mxu0 %v508
    %656 = vmatpush.bf16.msra.mxu0 %v506
    %657 = vmatpush.bf16.msra.mxu0 %v504
    %658 = vmatpush.bf16.msra.mxu0 %v502
    %659 = vmatpush.bf16.msra.mxu0 %v500
    %660 = vmatmul.bf16.gmra.mxu0 %v109
    %v661 = vpop.f32.mrf.mxu0
    %v662 = vadd.f32 %v648, %v661
    %v663 = vpop.f32.mrf.mxu0
    %v664 = vadd.f32 %v650, %v663
    %665 = vdwg.mxu0
    %666 = vmatpush.bf16.msra.mxu0 %v451
    %667 = vmatpush.bf16.msra.mxu0 %v449
    %668 = vmatpush.bf16.msra.mxu0 %v447
    %669 = vmatpush.bf16.msra.mxu0 %v445
    %670 = vmatpush.bf16.msra.mxu0 %v443
    %671 = vmatpush.bf16.msra.mxu0 %v441
    %672 = vmatpush.bf16.msra.mxu0 %v439
    %673 = vmatpush.bf16.msra.mxu0 %v437
    %674 = vmatmul.bf16.gmra.mxu0 %v105
    %v675 = vpop.f32.mrf.mxu0
    %v676 = vadd.f32 %v193, %v675
    %v677 = vpop.f32.mrf.mxu0
    %v678 = vadd.f32 %v193, %v677
    %679 = vdwg.mxu0
    %680 = vmatpush.bf16.msra.mxu0 %v467
    %681 = vmatpush.bf16.msra.mxu0 %v465
    %682 = vmatpush.bf16.msra.mxu0 %v463
    %683 = vmatpush.bf16.msra.mxu0 %v461
    %684 = vmatpush.bf16.msra.mxu0 %v459
    %685 = vmatpush.bf16.msra.mxu0 %v457
    %686 = vmatpush.bf16.msra.mxu0 %v455
    %687 = vmatpush.bf16.msra.mxu0 %v453
    %688 = vmatmul.bf16.gmra.mxu0 %v106
    %v689 = vpop.f32.mrf.mxu0
    %v690 = vadd.f32 %v676, %v689
    %v691 = vpop.f32.mrf.mxu0
    %v692 = vadd.f32 %v678, %v691
    %693 = vdwg.mxu0
    %694 = vmatpush.bf16.msra.mxu0 %v483
    %695 = vmatpush.bf16.msra.mxu0 %v481
    %696 = vmatpush.bf16.msra.mxu0 %v479
    %697 = vmatpush.bf16.msra.mxu0 %v477
    %698 = vmatpush.bf16.msra.mxu0 %v475
    %699 = vmatpush.bf16.msra.mxu0 %v473
    %700 = vmatpush.bf16.msra.mxu0 %v471
    %701 = vmatpush.bf16.msra.mxu0 %v469
    %702 = vmatmul.bf16.gmra.mxu0 %v107
    %v703 = vpop.f32.mrf.mxu0
    %v704 = vadd.f32 %v690, %v703
    %v705 = vpop.f32.mrf.mxu0
    %v706 = vadd.f32 %v692, %v705
    %707 = vdwg.mxu0
    %708 = vmatpush.bf16.msra.mxu0 %v499
    %709 = vmatpush.bf16.msra.mxu0 %v497
    %710 = vmatpush.bf16.msra.mxu0 %v495
    %711 = vmatpush.bf16.msra.mxu0 %v493
    %712 = vmatpush.bf16.msra.mxu0 %v491
    %713 = vmatpush.bf16.msra.mxu0 %v489
    %714 = vmatpush.bf16.msra.mxu0 %v487
    %715 = vmatpush.bf16.msra.mxu0 %v485
    %716 = vmatmul.bf16.gmra.mxu0 %v108
    %v717 = vpop.f32.mrf.mxu0
    %v718 = vadd.f32 %v704, %v717
    %v719 = vpop.f32.mrf.mxu0
    %v720 = vadd.f32 %v706, %v719
    %721 = vdwg.mxu0
    %722 = vmatpush.bf16.msra.mxu0 %v515
    %723 = vmatpush.bf16.msra.mxu0 %v513
    %724 = vmatpush.bf16.msra.mxu0 %v511
    %725 = vmatpush.bf16.msra.mxu0 %v509
    %726 = vmatpush.bf16.msra.mxu0 %v507
    %727 = vmatpush.bf16.msra.mxu0 %v505
    %728 = vmatpush.bf16.msra.mxu0 %v503
    %729 = vmatpush.bf16.msra.mxu0 %v501
    %730 = vmatmul.bf16.gmra.mxu0 %v109
    %v731 = vpop.f32.mrf.mxu0
    %v732 = vadd.f32 %v718, %v731
    %v733 = vpop.f32.mrf.mxu0
    %v734 = vadd.f32 %v720, %v733
    %735 = vdwg.mxu0
    %v736 = vmax.f32 %v662, 0.0
    %v737 = vmax.f32 %v732, 0.0
    %v738 = vmax.f32 %v664, 0.0
    %v739 = vmax.f32 %v734, 0.0
    %v740 = vpack.c.bf16 %v738, %v736
    %v741 = vpack.c.bf16 %v739, %v737
    %v742 = vld [vmem:[#allocation8] sm:$0xff]
    %v743 = vld [vmem:[#allocation8 + $0x8] sm:$0xff]
    %v744 = vld [vmem:[#allocation8 + $0x10] sm:$0xf]
    %v745 = vld [vmem:[#allocation8 + $0x14] sm:$0xff]
    %v746 = vld [vmem:[#allocation8 + $0x1c] sm:$0xff]
    %v747 = vld [vmem:[#allocation8 + $0x24] sm:$0xf]
    %v748 = vld [vmem:[#allocation8 + $0x28] sm:$0xff]
    %v749 = vld [vmem:[#allocation8 + $0x30] sm:$0xff]
    %v750 = vld [vmem:[#allocation8 + $0x38] sm:$0xf]
    %v751 = vld [vmem:[#allocation8 + $0x3c] sm:$0xff]
    %v752 = vld [vmem:[#allocation8 + $0x44] sm:$0xff]
    %v753 = vld [vmem:[#allocation8 + $0x4c] sm:$0xf]
    %v754 = vld [vmem:[#allocation8 + $0x50] sm:$0xff]
    %v755 = vld [vmem:[#allocation8 + $0x58] sm:$0xff]
    %v756 = vld [vmem:[#allocation8 + $0x60] sm:$0xf]
    %v757 = vld [vmem:[#allocation8 + $0x64] sm:$0xff]
    %v758 = vld [vmem:[#allocation8 + $0x6c] sm:$0xff]
    %v759 = vld [vmem:[#allocation8 + $0x74] sm:$0xf]
    %v760 = vld [vmem:[#allocation8 + $0x78] sm:$0xff]
    %v761 = vld [vmem:[#allocation8 + $0x80] sm:$0xff]
    %v762 = vld [vmem:[#allocation8 + $0x88] sm:$0xf]
    %v763 = vld [vmem:[#allocation8 + $0x8c] sm:$0xff]
    %v764 = vld [vmem:[#allocation8 + $0x94] sm:$0xff]
    %v765 = vld [vmem:[#allocation8 + $0x9c] sm:$0xf]
    %v766 = vld [vmem:[#allocation8 + $0xa0] sm:$0xff]
    %v767 = vld [vmem:[#allocation8 + $0xa8] sm:$0xff]
    %v768 = vld [vmem:[#allocation8 + $0xb0] sm:$0xf]
    %v769 = vld [vmem:[#allocation8 + $0xb4] sm:$0xff]
    %v770 = vld [vmem:[#allocation8 + $0xbc] sm:$0xff]
    %v771 = vld [vmem:[#allocation8 + $0xc4] sm:$0xf]
    %v772 = vld [vmem:[#allocation8 + $0xc8] sm:$0xff]
    %v773 = vld [vmem:[#allocation8 + $0xd0] sm:$0xff]
    %v774 = vld [vmem:[#allocation8 + $0xd8] sm:$0xf]
    %v775 = vld [vmem:[#allocation8 + $0xdc] sm:$0xff]
    %v776 = vld [vmem:[#allocation8 + $0xe4] sm:$0xff]
    %v777 = vld [vmem:[#allocation8 + $0xec] sm:$0xf]
    %v778 = vld [vmem:[#allocation8 + $0xf0] sm:$0xff]
    %v779 = vld [vmem:[#allocation8 + $0xf8] sm:$0xff]
    %v780 = vld [vmem:[#allocation8 + $0x100] sm:$0xf]
    %v781 = vld [vmem:[#allocation8 + $0x104] sm:$0xff]
    %v782 = vld [vmem:[#allocation8 + $0x10c] sm:$0xff]
    %v783 = vld [vmem:[#allocation8 + $0x114] sm:$0xf]
    %v784 = vld [vmem:[#allocation8 + $0x118] sm:$0xff]
    %v785 = vld [vmem:[#allocation8 + $0x120] sm:$0xff]
    %v786 = vld [vmem:[#allocation8 + $0x128] sm:$0xf]
    %v787 = vld [vmem:[#allocation8 + $0x12c] sm:$0xff]
    %v788 = vld [vmem:[#allocation8 + $0x134] sm:$0xff]
    %v789 = vld [vmem:[#allocation8 + $0x13c] sm:$0xf]
    %v790 = vld [vmem:[#allocation8 + $0x140] sm:$0xff]
    %v791 = vld [vmem:[#allocation8 + $0x148] sm:$0xff]
    %v792 = vld [vmem:[#allocation8 + $0x150] sm:$0xf]
    %v793 = vld [vmem:[#allocation8 + $0x154] sm:$0xff]
    %v794 = vld [vmem:[#allocation8 + $0x15c] sm:$0xff]
    %v795 = vld [vmem:[#allocation8 + $0x164] sm:$0xf]
    %v796 = vld [vmem:[#allocation8 + $0x168] sm:$0xff]
    %v797 = vld [vmem:[#allocation8 + $0x170] sm:$0xff]
    %v798 = vld [vmem:[#allocation8 + $0x178] sm:$0xf]
    %v799 = vld [vmem:[#allocation8 + $0x17c] sm:$0xff]
    %v800 = vld [vmem:[#allocation8 + $0x184] sm:$0xff]
    %v801 = vld [vmem:[#allocation8 + $0x18c] sm:$0xf]
    %v802 = vld [vmem:[#allocation8 + $0x190] sm:$0xff]
    %v803 = vld [vmem:[#allocation8 + $0x198] sm:$0xff]
    %v804 = vld [vmem:[#allocation8 + $0x1a0] sm:$0xf]
    %v805 = vld [vmem:[#allocation8 + $0x1a4] sm:$0xff]
    %v806 = vld [vmem:[#allocation8 + $0x1ac] sm:$0xff]
    %v807 = vld [vmem:[#allocation8 + $0x1b4] sm:$0xf]
    %v808 = vld [vmem:[#allocation8 + $0x1b8] sm:$0xff]
    %v809 = vld [vmem:[#allocation8 + $0x1c0] sm:$0xff]
    %v810 = vld [vmem:[#allocation8 + $0x1c8] sm:$0xf]
    %v811 = vld [vmem:[#allocation8 + $0x1cc] sm:$0xff]
    %v812 = vld [vmem:[#allocation8 + $0x1d4] sm:$0xff]
    %v813 = vld [vmem:[#allocation8 + $0x1dc] sm:$0xf]
    %v814 = vld [vmem:[#allocation8 + $0x1e0] sm:$0xff]
    %v815 = vld [vmem:[#allocation8 + $0x1e8] sm:$0xff]
    %v816 = vld [vmem:[#allocation8 + $0x1f0] sm:$0xf]
    %v817 = vld [vmem:[#allocation8 + $0x1f4] sm:$0xff]
    %v818 = vld [vmem:[#allocation8 + $0x1fc] sm:$0xff]
    %v819 = vld [vmem:[#allocation8 + $0x204] sm:$0xf]
    %v820 = vld [vmem:[#allocation8 + $0x208] sm:$0xff]
    %v821 = vld [vmem:[#allocation8 + $0x210] sm:$0xff]
    %v822 = vld [vmem:[#allocation8 + $0x218] sm:$0xf]
    %v823 = vld [vmem:[#allocation8 + $0x21c] sm:$0xff]
    %v824 = vld [vmem:[#allocation8 + $0x224] sm:$0xff]
    %v825 = vld [vmem:[#allocation8 + $0x22c] sm:$0xf]
    %v826 = vld [vmem:[#allocation8 + $0x230] sm:$0xff]
    %v827 = vld [vmem:[#allocation8 + $0x238] sm:$0xff]
    %v828 = vld [vmem:[#allocation8 + $0x240] sm:$0xf]
    %v829 = vld [vmem:[#allocation8 + $0x244] sm:$0xff]
    %v830 = vld [vmem:[#allocation8 + $0x24c] sm:$0xff]
    %v831 = vld [vmem:[#allocation8 + $0x254] sm:$0xf]
    %v832 = vld [vmem:[#allocation8 + $0x258] sm:$0xff]
    %v833 = vld [vmem:[#allocation8 + $0x260] sm:$0xff]
    %v834 = vld [vmem:[#allocation8 + $0x268] sm:$0xf]
    %v835 = vld [vmem:[#allocation8 + $0x26c] sm:$0xff]
    %v836 = vld [vmem:[#allocation8 + $0x274] sm:$0xff]
    %v837 = vld [vmem:[#allocation8 + $0x27c] sm:$0xf]
    %v838 = vld [vmem:[#allocation10] sm:$0x1f]
    %v840 = vperm.slane %v838, 0
    %v841 = vperm.slane %v838, 1
    %v842 = vperm.slane %v838, 2
    %v843 = vperm.slane %v838, 3
    %v844 = vperm.slane %v838, 4
    %v946 = vunpack.c.l.b16 %v742
    %v947 = vunpack.c.h.b16 %v742
    %v948 = vunpack.c.l.b16 %v743
    %v949 = vunpack.c.h.b16 %v743
    %v950 = vunpack.c.l.b16 %v744
    %v951 = vunpack.c.l.b16 %v745
    %v952 = vunpack.c.h.b16 %v745
    %v953 = vunpack.c.l.b16 %v746
    %v954 = vunpack.c.h.b16 %v746
    %v955 = vunpack.c.l.b16 %v747
    %v956 = vunpack.c.l.b16 %v748
    %v957 = vunpack.c.h.b16 %v748
    %v958 = vunpack.c.l.b16 %v749
    %v959 = vunpack.c.h.b16 %v749
    %v960 = vunpack.c.l.b16 %v750
    %v961 = vunpack.c.l.b16 %v751
    %v962 = vunpack.c.h.b16 %v751
    %v963 = vunpack.c.l.b16 %v752
    %v964 = vunpack.c.h.b16 %v752
    %v965 = vunpack.c.l.b16 %v753
    %v966 = vunpack.c.l.b16 %v754
    %v967 = vunpack.c.h.b16 %v754
    %v968 = vunpack.c.l.b16 %v755
    %v969 = vunpack.c.h.b16 %v755
    %v970 = vunpack.c.l.b16 %v756
    %v971 = vunpack.c.l.b16 %v757
    %v972 = vunpack.c.h.b16 %v757
    %v973 = vunpack.c.l.b16 %v758
    %v974 = vunpack.c.h.b16 %v758
    %v975 = vunpack.c.l.b16 %v759
    %v976 = vunpack.c.l.b16 %v760
    %v977 = vunpack.c.h.b16 %v760
    %v978 = vunpack.c.l.b16 %v761
    %v979 = vunpack.c.h.b16 %v761
    %v980 = vunpack.c.l.b16 %v762
    %v981 = vunpack.c.l.b16 %v763
    %v982 = vunpack.c.h.b16 %v763
    %v983 = vunpack.c.l.b16 %v764
    %v984 = vunpack.c.h.b16 %v764
    %v985 = vunpack.c.l.b16 %v765
    %v986 = vunpack.c.l.b16 %v766
    %v987 = vunpack.c.h.b16 %v766
    %v988 = vunpack.c.l.b16 %v767
    %v989 = vunpack.c.h.b16 %v767
    %v990 = vunpack.c.l.b16 %v768
    %v991 = vunpack.c.l.b16 %v769
    %v992 = vunpack.c.h.b16 %v769
    %v993 = vunpack.c.l.b16 %v770
    %v994 = vunpack.c.h.b16 %v770
    %v995 = vunpack.c.l.b16 %v771
    %v996 = vunpack.c.l.b16 %v772
    %v997 = vunpack.c.h.b16 %v772
    %v998 = vunpack.c.l.b16 %v773
    %v999 = vunpack.c.h.b16 %v773
    %v1000 = vunpack.c.l.b16 %v774
    %v1001 = vunpack.c.l.b16 %v775
    %v1002 = vunpack.c.h.b16 %v775
    %v1003 = vunpack.c.l.b16 %v776
    %v1004 = vunpack.c.h.b16 %v776
    %v1005 = vunpack.c.l.b16 %v777
    %v1006 = vunpack.c.l.b16 %v778
    %v1007 = vunpack.c.h.b16 %v778
    %v1008 = vunpack.c.l.b16 %v779
    %v1009 = vunpack.c.h.b16 %v779
    %v1010 = vunpack.c.l.b16 %v780
    %v1011 = vunpack.c.l.b16 %v781
    %v1012 = vunpack.c.h.b16 %v781
    %v1013 = vunpack.c.l.b16 %v782
    %v1014 = vunpack.c.h.b16 %v782
    %v1015 = vunpack.c.l.b16 %v783
    %v1016 = vunpack.c.l.b16 %v784
    %v1017 = vunpack.c.h.b16 %v784
    %v1018 = vunpack.c.l.b16 %v785
    %v1019 = vunpack.c.h.b16 %v785
    %v1020 = vunpack.c.l.b16 %v786
    %v1021 = vunpack.c.l.b16 %v787
    %v1022 = vunpack.c.h.b16 %v787
    %v1023 = vunpack.c.l.b16 %v788
    %v1024 = vunpack.c.h.b16 %v788
    %v1025 = vunpack.c.l.b16 %v789
    %v1026 = vunpack.c.l.b16 %v790
    %v1027 = vunpack.c.h.b16 %v790
    %v1028 = vunpack.c.l.b16 %v791
    %v1029 = vunpack.c.h.b16 %v791
    %v1030 = vunpack.c.l.b16 %v792
    %v1031 = vunpack.c.l.b16 %v793
    %v1032 = vunpack.c.h.b16 %v793
    %v1033 = vunpack.c.l.b16 %v794
    %v1034 = vunpack.c.h.b16 %v794
    %v1035 = vunpack.c.l.b16 %v795
    %v1036 = vunpack.c.l.b16 %v796
    %v1037 = vunpack.c.h.b16 %v796
    %v1038 = vunpack.c.l.b16 %v797
    %v1039 = vunpack.c.h.b16 %v797
    %v1040 = vunpack.c.l.b16 %v798
    %v1041 = vunpack.c.l.b16 %v799
    %v1042 = vunpack.c.h.b16 %v799
    %v1043 = vunpack.c.l.b16 %v800
    %v1044 = vunpack.c.h.b16 %v800
    %v1045 = vunpack.c.l.b16 %v801
    %v1046 = vunpack.c.l.b16 %v802
    %v1047 = vunpack.c.h.b16 %v802
    %v1048 = vunpack.c.l.b16 %v803
    %v1049 = vunpack.c.h.b16 %v803
    %v1050 = vunpack.c.l.b16 %v804
    %v1051 = vunpack.c.l.b16 %v805
    %v1052 = vunpack.c.h.b16 %v805
    %v1053 = vunpack.c.l.b16 %v806
    %v1054 = vunpack.c.h.b16 %v806
    %v1055 = vunpack.c.l.b16 %v807
    %v1056 = vunpack.c.l.b16 %v808
    %v1057 = vunpack.c.h.b16 %v808
    %v1058 = vunpack.c.l.b16 %v809
    %v1059 = vunpack.c.h.b16 %v809
    %v1060 = vunpack.c.l.b16 %v810
    %v1061 = vunpack.c.l.b16 %v811
    %v1062 = vunpack.c.h.b16 %v811
    %v1063 = vunpack.c.l.b16 %v812
    %v1064 = vunpack.c.h.b16 %v812
    %v1065 = vunpack.c.l.b16 %v813
    %v1066 = vunpack.c.l.b16 %v814
    %v1067 = vunpack.c.h.b16 %v814
    %v1068 = vunpack.c.l.b16 %v815
    %v1069 = vunpack.c.h.b16 %v815
    %v1070 = vunpack.c.l.b16 %v816
    %v1071 = vunpack.c.l.b16 %v817
    %v1072 = vunpack.c.h.b16 %v817
    %v1073 = vunpack.c.l.b16 %v818
    %v1074 = vunpack.c.h.b16 %v818
    %v1075 = vunpack.c.l.b16 %v819
    %v1076 = vunpack.c.l.b16 %v820
    %v1077 = vunpack.c.h.b16 %v820
    %v1078 = vunpack.c.l.b16 %v821
    %v1079 = vunpack.c.h.b16 %v821
    %v1080 = vunpack.c.l.b16 %v822
    %v1081 = vunpack.c.l.b16 %v823
    %v1082 = vunpack.c.h.b16 %v823
    %v1083 = vunpack.c.l.b16 %v824
    %v1084 = vunpack.c.h.b16 %v824
    %v1085 = vunpack.c.l.b16 %v825
    %v1086 = vunpack.c.l.b16 %v826
    %v1087 = vunpack.c.h.b16 %v826
    %v1088 = vunpack.c.l.b16 %v827
    %v1089 = vunpack.c.h.b16 %v827
    %v1090 = vunpack.c.l.b16 %v828
    %v1091 = vunpack.c.l.b16 %v829
    %v1092 = vunpack.c.h.b16 %v829
    %v1093 = vunpack.c.l.b16 %v830
    %v1094 = vunpack.c.h.b16 %v830
    %v1095 = vunpack.c.l.b16 %v831
    %v1096 = vunpack.c.l.b16 %v832
    %v1097 = vunpack.c.h.b16 %v832
    %v1098 = vunpack.c.l.b16 %v833
    %v1099 = vunpack.c.h.b16 %v833
    %v1100 = vunpack.c.l.b16 %v834
    %v1101 = vunpack.c.l.b16 %v835
    %v1102 = vunpack.c.h.b16 %v835
    %v1103 = vunpack.c.l.b16 %v836
    %v1104 = vunpack.c.h.b16 %v836
    %v1105 = vunpack.c.l.b16 %v837
    %v1106 = vpack.c.b16 %v951, %v946
    %v1107 = vpack.c.b16 %v952, %v947
    %v1108 = vpack.c.b16 %v953, %v948
    %v1109 = vpack.c.b16 %v954, %v949
    %v1110 = vpack.c.b16 %v955, %v950
    %v1111 = vpack.c.b16 %v961, %v956
    %v1112 = vpack.c.b16 %v962, %v957
    %v1113 = vpack.c.b16 %v963, %v958
    %v1114 = vpack.c.b16 %v964, %v959
    %v1115 = vpack.c.b16 %v965, %v960
    %v1116 = vpack.c.b16 %v971, %v966
    %v1117 = vpack.c.b16 %v972, %v967
    %v1118 = vpack.c.b16 %v973, %v968
    %v1119 = vpack.c.b16 %v974, %v969
    %v1120 = vpack.c.b16 %v975, %v970
    %v1121 = vpack.c.b16 %v981, %v976
    %v1122 = vpack.c.b16 %v982, %v977
    %v1123 = vpack.c.b16 %v983, %v978
    %v1124 = vpack.c.b16 %v984, %v979
    %v1125 = vpack.c.b16 %v985, %v980
    %v1126 = vpack.c.b16 %v991, %v986
    %v1127 = vpack.c.b16 %v992, %v987
    %v1128 = vpack.c.b16 %v993, %v988
    %v1129 = vpack.c.b16 %v994, %v989
    %v1130 = vpack.c.b16 %v995, %v990
    %v1131 = vpack.c.b16 %v1001, %v996
    %v1132 = vpack.c.b16 %v1002, %v997
    %v1133 = vpack.c.b16 %v1003, %v998
    %v1134 = vpack.c.b16 %v1004, %v999
    %v1135 = vpack.c.b16 %v1005, %v1000
    %v1136 = vpack.c.b16 %v1011, %v1006
    %v1137 = vpack.c.b16 %v1012, %v1007
    %v1138 = vpack.c.b16 %v1013, %v1008
    %v1139 = vpack.c.b16 %v1014, %v1009
    %v1140 = vpack.c.b16 %v1015, %v1010
    %v1141 = vpack.c.b16 %v1021, %v1016
    %v1142 = vpack.c.b16 %v1022, %v1017
    %v1143 = vpack.c.b16 %v1023, %v1018
    %v1144 = vpack.c.b16 %v1024, %v1019
    %v1145 = vpack.c.b16 %v1025, %v1020
    %v1146 = vpack.c.b16 %v1031, %v1026
    %v1147 = vpack.c.b16 %v1032, %v1027
    %v1148 = vpack.c.b16 %v1033, %v1028
    %v1149 = vpack.c.b16 %v1034, %v1029
    %v1150 = vpack.c.b16 %v1035, %v1030
    %v1151 = vpack.c.b16 %v1041, %v1036
    %v1152 = vpack.c.b16 %v1042, %v1037
    %v1153 = vpack.c.b16 %v1043, %v1038
    %v1154 = vpack.c.b16 %v1044, %v1039
    %v1155 = vpack.c.b16 %v1045, %v1040
    %v1156 = vpack.c.b16 %v1051, %v1046
    %v1157 = vpack.c.b16 %v1052, %v1047
    %v1158 = vpack.c.b16 %v1053, %v1048
    %v1159 = vpack.c.b16 %v1054, %v1049
    %v1160 = vpack.c.b16 %v1055, %v1050
    %v1161 = vpack.c.b16 %v1061, %v1056
    %v1162 = vpack.c.b16 %v1062, %v1057
    %v1163 = vpack.c.b16 %v1063, %v1058
    %v1164 = vpack.c.b16 %v1064, %v1059
    %v1165 = vpack.c.b16 %v1065, %v1060
    %v1166 = vpack.c.b16 %v1071, %v1066
    %v1167 = vpack.c.b16 %v1072, %v1067
    %v1168 = vpack.c.b16 %v1073, %v1068
    %v1169 = vpack.c.b16 %v1074, %v1069
    %v1170 = vpack.c.b16 %v1075, %v1070
    %v1171 = vpack.c.b16 %v1081, %v1076
    %v1172 = vpack.c.b16 %v1082, %v1077
    %v1173 = vpack.c.b16 %v1083, %v1078
    %v1174 = vpack.c.b16 %v1084, %v1079
    %v1175 = vpack.c.b16 %v1085, %v1080
    %v1176 = vpack.c.b16 %v1091, %v1086
    %v1177 = vpack.c.b16 %v1092, %v1087
    %v1178 = vpack.c.b16 %v1093, %v1088
    %v1179 = vpack.c.b16 %v1094, %v1089
    %v1180 = vpack.c.b16 %v1095, %v1090
    %v1181 = vpack.c.b16 %v1101, %v1096
    %v1182 = vpack.c.b16 %v1102, %v1097
    %v1183 = vpack.c.b16 %v1103, %v1098
    %v1184 = vpack.c.b16 %v1104, %v1099
    %v1185 = vpack.c.b16 %v1105, %v1100
    %1266 = vmatpush.bf16.msra.mxu0 %v1141
    %1267 = vmatpush.bf16.msra.mxu0 %v1136
    %1268 = vmatpush.bf16.msra.mxu0 %v1131
    %1269 = vmatpush.bf16.msra.mxu0 %v1126
    %1270 = vmatpush.bf16.msra.mxu0 %v1121
    %1271 = vmatpush.bf16.msra.mxu0 %v1116
    %1272 = vmatpush.bf16.msra.mxu0 %v1111
    %1273 = vmatpush.bf16.msra.mxu0 %v1106
    %1274 = vmatmul.bf16.gmra.mxu0 %v740
    %v1275 = vpop.f32.mrf.mxu0
    %v1276 = vadd.f32 %v840, %v1275
    %v1277 = vpop.f32.mrf.mxu0
    %v1278 = vadd.f32 %v840, %v1277
    %1279 = vdwg.mxu0
    %1280 = vmatpush.bf16.msra.mxu0 %v1181
    %1281 = vmatpush.bf16.msra.mxu0 %v1176
    %1282 = vmatpush.bf16.msra.mxu0 %v1171
    %1283 = vmatpush.bf16.msra.mxu0 %v1166
    %1284 = vmatpush.bf16.msra.mxu0 %v1161
    %1285 = vmatpush.bf16.msra.mxu0 %v1156
    %1286 = vmatpush.bf16.msra.mxu0 %v1151
    %1287 = vmatpush.bf16.msra.mxu0 %v1146
    %1288 = vmatmul.bf16.gmra.mxu0 %v741
    %v1289 = vpop.f32.mrf.mxu0
    %v1290 = vadd.f32 %v1276, %v1289
    %v1291 = vpop.f32.mrf.mxu0
    %v1292 = vadd.f32 %v1278, %v1291
    %1293 = vdwg.mxu0
    %1294 = vmatpush.bf16.msra.mxu0 %v1142
    %1295 = vmatpush.bf16.msra.mxu0 %v1137
    %1296 = vmatpush.bf16.msra.mxu0 %v1132
    %1297 = vmatpush.bf16.msra.mxu0 %v1127
    %1298 = vmatpush.bf16.msra.mxu0 %v1122
    %1299 = vmatpush.bf16.msra.mxu0 %v1117
    %1300 = vmatpush.bf16.msra.mxu0 %v1112
    %1301 = vmatpush.bf16.msra.mxu0 %v1107
    %1302 = vmatmul.bf16.gmra.mxu0 %v740
    %v1303 = vpop.f32.mrf.mxu0
    %v1304 = vadd.f32 %v841, %v1303
    %v1305 = vpop.f32.mrf.mxu0
    %v1306 = vadd.f32 %v841, %v1305
    %1307 = vdwg.mxu0
    %1308 = vmatpush.bf16.msra.mxu0 %v1182
    %1309 = vmatpush.bf16.msra.mxu0 %v1177
    %1310 = vmatpush.bf16.msra.mxu0 %v1172
    %1311 = vmatpush.bf16.msra.mxu0 %v1167
    %1312 = vmatpush.bf16.msra.mxu0 %v1162
    %1313 = vmatpush.bf16.msra.mxu0 %v1157
    %1314 = vmatpush.bf16.msra.mxu0 %v1152
    %1315 = vmatpush.bf16.msra.mxu0 %v1147
    %1316 = vmatmul.bf16.gmra.mxu0 %v741
    %v1317 = vpop.f32.mrf.mxu0
    %v1318 = vadd.f32 %v1304, %v1317
    %v1319 = vpop.f32.mrf.mxu0
    %v1320 = vadd.f32 %v1306, %v1319
    %1321 = vdwg.mxu0
    %1322 = vmatpush.bf16.msra.mxu0 %v1143
    %1323 = vmatpush.bf16.msra.mxu0 %v1138
    %1324 = vmatpush.bf16.msra.mxu0 %v1133
    %1325 = vmatpush.bf16.msra.mxu0 %v1128
    %1326 = vmatpush.bf16.msra.mxu0 %v1123
    %1327 = vmatpush.bf16.msra.mxu0 %v1118
    %1328 = vmatpush.bf16.msra.mxu0 %v1113
    %1329 = vmatpush.bf16.msra.mxu0 %v1108
    %1330 = vmatmul.bf16.gmra.mxu0 %v740
    %v1331 = vpop.f32.mrf.mxu0
    %v1332 = vadd.f32 %v842, %v1331
    %v1333 = vpop.f32.mrf.mxu0
    %v1334 = vadd.f32 %v842, %v1333
    %1335 = vdwg.mxu0
    %1336 = vmatpush.bf16.msra.mxu0 %v1183
    %1337 = vmatpush.bf16.msra.mxu0 %v1178
    %1338 = vmatpush.bf16.msra.mxu0 %v1173
    %1339 = vmatpush.bf16.msra.mxu0 %v1168
    %1340 = vmatpush.bf16.msra.mxu0 %v1163
    %1341 = vmatpush.bf16.msra.mxu0 %v1158
    %1342 = vmatpush.bf16.msra.mxu0 %v1153
    %1343 = vmatpush.bf16.msra.mxu0 %v1148
    %1344 = vmatmul.bf16.gmra.mxu0 %v741
    %v1345 = vpop.f32.mrf.mxu0
    %v1346 = vadd.f32 %v1332, %v1345
    %v1347 = vpop.f32.mrf.mxu0
    %v1348 = vadd.f32 %v1334, %v1347
    %1349 = vdwg.mxu0
    %1350 = vmatpush.bf16.msra.mxu0 %v1144
    %1351 = vmatpush.bf16.msra.mxu0 %v1139
    %1352 = vmatpush.bf16.msra.mxu0 %v1134
    %1353 = vmatpush.bf16.msra.mxu0 %v1129
    %1354 = vmatpush.bf16.msra.mxu0 %v1124
    %1355 = vmatpush.bf16.msra.mxu0 %v1119
    %1356 = vmatpush.bf16.msra.mxu0 %v1114
    %1357 = vmatpush.bf16.msra.mxu0 %v1109
    %1358 = vmatmul.bf16.gmra.mxu0 %v740
    %v1359 = vpop.f32.mrf.mxu0
    %v1360 = vadd.f32 %v843, %v1359
    %v1361 = vpop.f32.mrf.mxu0
    %v1362 = vadd.f32 %v843, %v1361
    %1363 = vdwg.mxu0
    %1364 = vmatpush.bf16.msra.mxu0 %v1184
    %1365 = vmatpush.bf16.msra.mxu0 %v1179
    %1366 = vmatpush.bf16.msra.mxu0 %v1174
    %1367 = vmatpush.bf16.msra.mxu0 %v1169
    %1368 = vmatpush.bf16.msra.mxu0 %v1164
    %1369 = vmatpush.bf16.msra.mxu0 %v1159
    %1370 = vmatpush.bf16.msra.mxu0 %v1154
    %1371 = vmatpush.bf16.msra.mxu0 %v1149
    %1372 = vmatmul.bf16.gmra.mxu0 %v741
    %v1373 = vpop.f32.mrf.mxu0
    %v1374 = vadd.f32 %v1360, %v1373
    %v1375 = vpop.f32.mrf.mxu0
    %v1376 = vadd.f32 %v1362, %v1375
    %1377 = vdwg.mxu0
    %1378 = vmatpush.bf16.msra.mxu0 %v1145
    %1379 = vmatpush.bf16.msra.mxu0 %v1140
    %1380 = vmatpush.bf16.msra.mxu0 %v1135
    %1381 = vmatpush.bf16.msra.mxu0 %v1130
    %1382 = vmatpush.bf16.msra.mxu0 %v1125
    %1383 = vmatpush.bf16.msra.mxu0 %v1120
    %1384 = vmatpush.bf16.msra.mxu0 %v1115
    %1385 = vmatpush.bf16.msra.mxu0 %v1110
    %1386 = vmatmul.bf16.gmra.mxu0 %v740
    %v1387 = vpop.f32.mrf.mxu0
    %v1388 = vadd.f32 %v844, %v1387
    %v1389 = vpop.f32.mrf.mxu0
    %v1390 = vadd.f32 %v844, %v1389
    %1391 = vdwg.mxu0
    %1392 = vmatpush.bf16.msra.mxu0 %v1185
    %1393 = vmatpush.bf16.msra.mxu0 %v1180
    %1394 = vmatpush.bf16.msra.mxu0 %v1175
    %1395 = vmatpush.bf16.msra.mxu0 %v1170
    %1396 = vmatpush.bf16.msra.mxu0 %v1165
    %1397 = vmatpush.bf16.msra.mxu0 %v1160
    %1398 = vmatpush.bf16.msra.mxu0 %v1155
    %1399 = vmatpush.bf16.msra.mxu0 %v1150
    %1400 = vmatmul.bf16.gmra.mxu0 %v741
    %v1401 = vpop.f32.mrf.mxu0
    %v1402 = vadd.f32 %v1388, %v1401
    %v1403 = vpop.f32.mrf.mxu0
    %v1404 = vadd.f32 %v1390, %v1403
    %1405 = vdwg.mxu0
    %v1406 = vpack.c.bf16 %v1318, %v1290
    %v1407 = vpack.c.bf16 %v1374, %v1346
    %v1408 = vpack.c.bf16 %v1402, %v1402
    %v1409 = vpack.c.bf16 %v1320, %v1292
    %v1410 = vpack.c.bf16 %v1376, %v1348
    %v1411 = vpack.c.bf16 %v1404, %v1404
    %1412 = vst [vmem:[#allocation11] sm:$0xff] %v1406
    %1413 = vst [vmem:[#allocation11 + $0x8] sm:$0xff] %v1407
    %1414 = vst [vmem:[#allocation11 + $0x10] sm:$0xf] %v1408
    %1415 = vst [vmem:[#allocation11 + $0x14] sm:$0xff] %v1409
    %1416 = vst [vmem:[#allocation11 + $0x1c] sm:$0xff] %v1410
    %1417 = vst [vmem:[#allocation11 + $0x24] sm:$0xf] %v1411
    // Predicated region
    $region42: #{relation_module_forward.1} parent=1 // pred_check
      _
    $region43: #{relation_module_forward.1} parent=1 // pred_check_branch
      %1419 = sbr.rel (0) target = $region45
    $region44: #{relation_module_forward.1} parent=1 // pred_region
      %1421 = vsyncadd [#allocation4], 0
      %s1422 = sshll.u32 [#allocation11], 4
      %s1423 = int_to_ptr.vmem [resolvable:$true] %s1422
      %s1424 = sshll.u32 %s5, 4
      %s1425 = int_to_ptr.hbm [resolvable:$true] %s1424
      %1430 = dma.vmem_to_hbm [thread:$0]  %s1423, 640, %s1425, [#allocation4], 320, 320, 20
    $region45: #{relation_module_forward.1} parent=1 // pred_fallthru
      _
    // Predicated region
    $region46: #{relation_module_forward.1} parent=1 // pred_check
      _
    $region47: #{relation_module_forward.1} parent=1 // pred_check_branch
      %1432 = sbr.rel (0) target = $region49
    $region48: #{relation_module_forward.1} parent=1 // pred_region
      %1434 = dma.done [#allocation4], 640
    $region49: #{relation_module_forward.1} parent=1 // pred_fallthru
      _
    %1435 = vsyncpa [#allocation3], 1
    %1436 = vsyncpa [#allocation6], 1
    %1437 = vsyncpa [#allocation9], 1
    %1438 = vsyncpa [#allocation4], 1

</llo_original>
